<compile_context>
chip_gen: v5e
topology: v5e:2x2
jax: 0.10.0
libtpu: 0.0.40
codegen_flags: <defaults>
</compile_context>

<pallas_src>
import math
import functools

import jax
import jax.numpy as jnp
from jax import lax
from jax.experimental import pallas as pl
from jax.experimental.pallas import tpu as pltpu

# 48 MiB: > v5e default scoped limit (16 MiB), < v7x physical VMEM (64 MiB).
_VMEM_LIMIT_BYTES = 48 * 1024 * 1024


def _elu(x):
    # PyTorch nn.ELU with alpha=1: x if x > 0 else exp(x) - 1
    return jnp.where(x > 0, x, jnp.exp(x) - 1.0)


# ----------------------------------------------------------------------------
# Kernel 1: key / value projections (shared across batch), tiled over S.
#   kn = L2-normalized-per-head elu(src @ Wk + bk)   (stored in compute dtype)
#   v  = val @ Wv + bv                               (stored in compute dtype)
# Per-head sum-of-squares uses a one-hot (HE, H) "segment" matrix on the MXU,
# so the normalization is full-width (no per-head slices / masked stores).
# ----------------------------------------------------------------------------
def kv_proj_kernel(src_ref, val_ref, wk_ref, bk_ref, wv_ref, bv_ref, seg_ref,
                   kn_ref, v_ref):
    f32 = jnp.float32
    cdt = kn_ref.dtype

    k = jnp.dot(src_ref[...], wk_ref[...],
                preferred_element_type=f32) + bk_ref[...]            # (TS, HE)
    ek = _elu(k)                                                     # f32
    # segment matmuls in compute dtype, f32 accumulation
    sumsq = jnp.dot((ek * ek).astype(cdt), seg_ref[...],
                    preferred_element_type=f32)                      # (TS, H)
    # NOTE: no eps, faithful to the reference (1 / norm).
    inv = lax.rsqrt(sumsq)                                           # (TS, H)
    inv_full = lax.dot_general(inv.astype(cdt), seg_ref[...],
                               (((1,), (1,)), ((), ())),
                               preferred_element_type=f32)           # (TS, HE)
    kn_ref[...] = (ek * inv_full).astype(kn_ref.dtype)

    v = jnp.dot(val_ref[...], wv_ref[...],
                preferred_element_type=f32) + bv_ref[...]
    v_ref[...] = v.astype(v_ref.dtype)


# ----------------------------------------------------------------------------
# Kernel 2: per-batch-tile attention + out projection + residual + LayerNorm.
# grid = (Bp // TB,); each grid step processes TB batch elements fully in VMEM.
# Query rows are ordered (l, b); output/hidden rows are ordered (h, b); since
# the module requires L == H these line up for the residual add.
# ----------------------------------------------------------------------------
def attn_kernel(x_ref, wq_ref, bq_ref, kn_ref, v_ref, wo_ref, bo_ref,
                gamma_ref, beta_ref, seg_ref, o_ref, ctx_sc,
                *, n_heads, d_keys, seq_len, batch_tile, eps, approx_recip):
    f32 = jnp.float32
    H, E, L, TB = n_heads, d_keys, seq_len, batch_tile
    M = L * TB
    scale = 1.0 / math.sqrt(E)
    cdt = kn_ref.dtype
    d_model = x_ref.shape[-1]

    # (L, TB, d_model) -> (L*TB, d_model): free regrouping (TB % 8 == 0).
    x = x_ref[...].reshape(M, d_model).astype(f32)

    # query projection + ELU + per-head L2 norm, all full-width matmuls.
    q = jnp.dot(x.astype(cdt), wq_ref[...],
                preferred_element_type=f32) + bq_ref[...]            # (M, HE)
    eq = _elu(q)
    sumsq = jnp.dot((eq * eq).astype(cdt), seg_ref[...],
                    preferred_element_type=f32)                      # (M, H)
    inv = lax.rsqrt(sumsq)
    inv_full = lax.dot_general(inv.astype(cdt), seg_ref[...],
                               (((1,), (1,)), ((), ())),
                               preferred_element_type=f32)           # (M, HE)
    qn = (eq * inv_full).astype(cdt)                                 # (M, HE)

    # per-head attention: kn/v are head-major so per-head access is a leading
    # index (no lane slicing of the big key/value arrays).  ctx is staged in a
    # VMEM scratch laid out (L, H*TB, E) so the out-projection reads
    # contiguous, sublane-aligned slabs.
    for h in range(H):
        q_h = qn[:, h * E:(h + 1) * E]                               # (M, E)
        k_h = kn_ref[h]                                              # (S, E)
        s = lax.dot_general(q_h, k_h, (((1,), (1,)), ((), ())),
                            preferred_element_type=f32) * scale      # (M, S)
        s = s - jnp.max(s, axis=-1, keepdims=True)
        p = jnp.exp(s)
        denom = jnp.sum(p, axis=-1, keepdims=True)
        if approx_recip:
            a = p * pl.reciprocal(denom, approx=True)
        else:
            a = p / denom
        c = jnp.dot(a.astype(cdt), v_ref[h],
                    preferred_element_type=f32)                      # (M, E)
        ctx_sc[:, h * TB:(h + 1) * TB, :] = c.reshape(L, TB, E).astype(cdt)

    # out projection: hidden[(h,b), :] = sum_l ctx[b,l,h,:] @ wo[l*E:(l+1)*E,:]
    # -> L accumulated matmuls with M = H*TB, contiguous operands.
    acc = jnp.zeros((H * TB, d_model), f32)
    for l in range(L):
        acc = acc + jnp.dot(ctx_sc[l], wo_ref[l * E:(l + 1) * E, :],
                            preferred_element_type=f32)
    hidden = acc + bo_ref[...]                                       # (H*TB, dm)

    # residual (valid because L == n_heads: row (h, b) aligns with row (l, b))
    # + LayerNorm, single dense (L, TB, d_model) store.
    y = hidden + x
    mu = jnp.mean(y, axis=-1, keepdims=True)
    var = jnp.mean((y - mu) * (y - mu), axis=-1, keepdims=True)
    out = (y - mu) * lax.rsqrt(var + eps) * gamma_ref[...] + beta_ref[...]
    o_ref[...] = out.reshape(L, TB, d_model).astype(o_ref.dtype)


# ----------------------------------------------------------------------------
# Wrapper
# ----------------------------------------------------------------------------
def reprogramming_layer_lin(target, source, value, params, *, n_heads,
                            eps=1e-12, compute_dtype=jnp.bfloat16,
                            s_tile=256, batch_tile=8):
    B, L, d_model = target.shape
    S, d_llm = source.shape
    HE = params["wq"].shape[1]
    H = n_heads
    E = HE // n_heads
    assert L == n_heads, "original module requires L == n_heads (permute+view)"
    assert batch_tile % 8 == 0 and s_tile % 8 == 0

    cdt = jnp.dtype(compute_dtype)
    f32 = jnp.float32

    # one-hot segment matrix: seg[j, h] = 1 iff column j belongs to head h
    # (exactly representable in bf16).
    seg = (jnp.arange(HE, dtype=jnp.int32)[:, None] // E
           == jnp.arange(H, dtype=jnp.int32)[None, :]).astype(cdt)

    # matmul operands in compute dtype; biases / LayerNorm params stay f32.
    wq = params["wq"].astype(cdt)
    wk = params["wk"].astype(cdt)
    wv = params["wv"].astype(cdt)
    wo = params["wo"].astype(cdt)
    bq = params["bq"].astype(f32)
    bk = params["bk"].astype(f32)
    bv = params["bv"].astype(f32)
    bo = params["bo"].astype(f32)
    gamma = params["gamma"].astype(f32)
    beta = params["beta"].astype(f32)
    src = source.astype(cdt)
    val = value.astype(cdt)

    # ---- kernel 1: key-norm / value projections, tiled & pipelined over S ----
    # TODO(synk): when source_embedding is value_embedding, Wk/Wv could be
    # fused into one (d_llm, 2*HE) matmul and the duplicate source DMA dropped.
    TS = S if S <= s_tile else s_tile
    Sp = pl.cdiv(S, TS) * TS
    if Sp != S:
        src = jnp.pad(src, ((0, Sp - S), (0, 0)))
        val = jnp.pad(val, ((0, Sp - S), (0, 0)))

    kn_flat, v_flat = pl.pallas_call(
        kv_proj_kernel,
        grid=(Sp // TS,),
        in_specs=[
            pl.BlockSpec((TS, d_llm), lambda i: (i, 0)),
            pl.BlockSpec((TS, d_llm), lambda i: (i, 0)),
            pl.BlockSpec((d_llm, HE), lambda i: (0, 0)),
            pl.BlockSpec((1, HE), lambda i: (0, 0)),
            pl.BlockSpec((d_llm, HE), lambda i: (0, 0)),
            pl.BlockSpec((1, HE), lambda i: (0, 0)),
            pl.BlockSpec((HE, H), lambda i: (0, 0)),
        ],
        out_specs=[
            pl.BlockSpec((TS, HE), lambda i: (i, 0)),
            pl.BlockSpec((TS, HE), lambda i: (i, 0)),
        ],
        out_shape=[
            jax.ShapeDtypeStruct((Sp, HE), cdt),
            jax.ShapeDtypeStruct((Sp, HE), cdt),
        ],
        compiler_params=pltpu.CompilerParams(
            dimension_semantics=("parallel",),
            vmem_limit_bytes=_VMEM_LIMIT_BYTES),
    )(src, val, wk, bk, wv, bv, seg)

    # head-major relayout (wrapper-side layout plumbing, cheap in XLA):
    # (S, H*E) -> (H, S, E) so kernel-2 per-head access is a leading index.
    kn_hm = kn_flat[:S].reshape(S, H, E).transpose(1, 0, 2)
    v_hm = v_flat[:S].reshape(S, H, E).transpose(1, 0, 2)

    # ---- kernel 2: batched attention + out-proj + residual + LayerNorm ------
    # Rows are (l, b)-ordered inside the kernel, so the wrapper feeds target
    # as (L, B, d_model); the transposes are tiny XLA ops.
    TB = batch_tile
    Bp = pl.cdiv(B, TB) * TB
    target_t = jnp.transpose(target, (1, 0, 2))                     # (L, B, dm)
    if Bp != B:
        target_t = jnp.pad(target_t, ((0, 0), (0, Bp - B), (0, 0)))

    attn = functools.partial(
        attn_kernel, n_heads=H, d_keys=E, seq_len=L, batch_tile=TB,
        eps=eps, approx_recip=(cdt != jnp.dtype(jnp.float32)))

    out_t = pl.pallas_call(
        attn,
        grid=(Bp // TB,),
        in_specs=[
            pl.BlockSpec((L, TB, d_model), lambda i: (0, i, 0)),
            pl.BlockSpec((d_model, HE), lambda i: (0, 0)),
            pl.BlockSpec((1, HE), lambda i: (0, 0)),
            pl.BlockSpec((H, S, E), lambda i: (0, 0, 0)),
            pl.BlockSpec((H, S, E), lambda i: (0, 0, 0)),
            pl.BlockSpec((HE, d_model), lambda i: (0, 0)),
            pl.BlockSpec((1, d_model), lambda i: (0, 0)),
            pl.BlockSpec((1, d_model), lambda i: (0, 0)),
            pl.BlockSpec((1, d_model), lambda i: (0, 0)),
            pl.BlockSpec((HE, H), lambda i: (0, 0)),
        ],
        out_specs=pl.BlockSpec((L, TB, d_model), lambda i: (0, i, 0)),
        out_shape=jax.ShapeDtypeStruct((L, Bp, d_model), target.dtype),
        scratch_shapes=[pltpu.VMEM((L, H * TB, E), cdt)],
        compiler_params=pltpu.CompilerParams(
            dimension_semantics=("parallel",),
            vmem_limit_bytes=_VMEM_LIMIT_BYTES),
    )(target_t, wq, bq, kn_hm, v_hm, wo, bo, gamma, beta, seg)

    return jnp.transpose(out_t[:, :B, :], (1, 0, 2))                # (B, L, dm)


# ----------------------------------------------------------------------------
# Pure-JAX reference (mirrors the PyTorch forward exactly, eval mode, f32).
# Matmuls forced to HIGHEST precision so the reference itself is f32-accurate.
# ----------------------------------------------------------------------------
def reference(target, source, value, params, n_heads, eps=1e-12):
    hp = lax.Precision.HIGHEST
    B, L, d_model = target.shape
    S, _ = source.shape
    HE = params["wq"].shape[1]
    E = HE // n_heads
    q = (jnp.matmul(target, params["wq"], precision=hp)
         + params["bq"][0]).reshape(B, L, n_heads, E)
    k = (jnp.matmul(source, params["wk"], precision=hp)
         + params["bk"][0]).reshape(S, n_heads, E)
    v = (jnp.matmul(value, params["wv"], precision=hp)
         + params["bv"][0]).reshape(S, n_heads, E)
    eq, ek = _elu(q), _elu(k)
    qn = eq / jnp.linalg.norm(eq, axis=3, keepdims=True)
    kn = ek / jnp.linalg.norm(ek, axis=2, keepdims=True)
    scores = jnp.einsum('blhe,she->bhls', qn, kn, precision=hp)
    A = jax.nn.softmax(scores / math.sqrt(E), axis=-1)
    ctx = jnp.einsum('bhls,she->blhe', A, v, precision=hp)
    ctx = jnp.transpose(ctx, (0, 2, 1, 3)).reshape(B, n_heads, n_heads * E)
    hid = jnp.matmul(ctx, params["wo"], precision=hp) + params["bo"][0]
    y = hid + target
    mu = jnp.mean(y, axis=-1, keepdims=True)
    var = jnp.mean((y - mu) ** 2, axis=-1, keepdims=True)
    return (y - mu) / jnp.sqrt(var + eps) * params["gamma"][0] + params["beta"][0]


if __name__ == "__main__":
    # small shapes; L must equal n_heads (see NOTE above)
    B, L, d_model, n_heads, d_llm, S = 2, 4, 32, 4, 64, 16
    E = d_model // n_heads
    HE = n_heads * E

    key = jax.random.PRNGKey(0)
    ks = jax.random.split(key, 10)
    params = {
        "wq": jax.random.normal(ks[0], (d_model, HE), jnp.float32) * 0.1,
        "bq": jax.random.normal(ks[1], (1, HE), jnp.float32) * 0.1,
        "wk": jax.random.normal(ks[2], (d_llm, HE), jnp.float32) * 0.1,
        "bk": jax.random.normal(ks[3], (1, HE), jnp.float32) * 0.1,
        "wv": jax.random.normal(ks[4], (d_llm, HE), jnp.float32) * 0.1,
        "bv": jax.random.normal(ks[5], (1, HE), jnp.float32) * 0.1,
        "wo": jax.random.normal(ks[6], (HE, d_model), jnp.float32) * 0.1,
        "bo": jax.random.normal(ks[7], (1, d_model), jnp.float32) * 0.1,
        "gamma": jnp.ones((1, d_model), jnp.float32),
        "beta": jnp.zeros((1, d_model), jnp.float32),
    }
    target = jax.random.normal(ks[8], (B, L, d_model), jnp.float32)
    sv = jax.random.normal(ks[9], (2, S, d_llm), jnp.float32)
    source, value = sv[0], sv[1]

    ref = reference(target, source, value, params, n_heads)
    ref = jax.block_until_ready(ref)

    # f32 compute path: tight-ish numerical check vs the high-precision
    # reference (tolerance allows for MXU f32-emulation differences).
    out32 = reprogramming_layer_lin(target, source, value, params,
                                    n_heads=n_heads,
                                    compute_dtype=jnp.float32)
    out32 = jax.block_until_ready(out32)
    assert out32.shape == (B, L, d_model)
    err32 = float(jnp.max(jnp.abs(out32 - ref)))
    assert err32 < 2e-2, f"f32 kernel mismatch vs reference, max_err={err32}"

    # bf16-matmul path (recommended on v6e/v7x): f32 accumulation + f32
    # elementwise math, so it tracks the f32 reference within bf16 tolerance.
    outbf = reprogramming_layer_lin(target, source, value, params,
                                    n_heads=n_heads,
                                    compute_dtype=jnp.bfloat16)
    outbf = jax.block_until_ready(outbf)
    errbf = float(jnp.max(jnp.abs(outbf - ref)))
    assert errbf < 2e-1, f"bf16 kernel mismatch vs reference, max_err={errbf}"

    print("KERNEL_OK")
</pallas_src>

<mosaic_0001>
module attributes {stable_mosaic.version = 11 : i64} {
  func.func @kv_proj_kernel(%arg0: i32, %arg1: memref<16x64xf32, #tpu.memory_space<vmem>>, %arg2: memref<16x64xf32, #tpu.memory_space<vmem>>, %arg3: memref<64x32xf32, #tpu.memory_space<vmem>>, %arg4: memref<1x32xf32, #tpu.memory_space<vmem>>, %arg5: memref<64x32xf32, #tpu.memory_space<vmem>>, %arg6: memref<1x32xf32, #tpu.memory_space<vmem>>, %arg7: memref<32x4xf32, #tpu.memory_space<vmem>>, %arg8: memref<16x32xf32, #tpu.memory_space<vmem>>, %arg9: memref<16x32xf32, #tpu.memory_space<vmem>>) attributes {dimension_semantics = [#tpu.dimension_semantics<parallel>], iteration_bounds = array<i64: 1>, scalar_prefetch = 0 : i64, scratch_operands = 0 : i64, tpu.core_type = #tpu.core_type<tc>, window_params = [{transform_indices = @transform_0, window_bounds = array<i64: 16, 64>}, {transform_indices = @transform_1, window_bounds = array<i64: 16, 64>}, {pipeline_mode = #tpu.pipeline_mode<synchronous>, transform_indices = @transform_2, window_bounds = array<i64: 64, 32>}, {pipeline_mode = #tpu.pipeline_mode<synchronous>, transform_indices = @transform_3, window_bounds = array<i64: 1, 32>}, {pipeline_mode = #tpu.pipeline_mode<synchronous>, transform_indices = @transform_4, window_bounds = array<i64: 64, 32>}, {pipeline_mode = #tpu.pipeline_mode<synchronous>, transform_indices = @transform_5, window_bounds = array<i64: 1, 32>}, {pipeline_mode = #tpu.pipeline_mode<synchronous>, transform_indices = @transform_6, window_bounds = array<i64: 32, 4>}, {transform_indices = @transform_7, window_bounds = array<i64: 16, 32>}, {transform_indices = @transform_8, window_bounds = array<i64: 16, 32>}]} {
    %c0 = arith.constant 0 : index
    %c0_0 = arith.constant 0 : index
    %0 = vector.load %arg1[%c0, %c0_0] : memref<16x64xf32, #tpu.memory_space<vmem>>, vector<16x64xf32>
    %c0_1 = arith.constant 0 : index
    %c0_2 = arith.constant 0 : index
    %1 = vector.load %arg3[%c0_1, %c0_2] : memref<64x32xf32, #tpu.memory_space<vmem>>, vector<64x32xf32>
    %cst = arith.constant dense<0.000000e+00> : vector<16x32xf32>
    %2 = tpu.matmul %0, %1, %cst {dimension_numbers = #tpu.dot_dimension_numbers<[1], [0], [0], [1], [0, 0, 1, 1], [], []>} : vector<16x64xf32>, vector<64x32xf32>, vector<16x32xf32> -> vector<16x32xf32>
    %c0_3 = arith.constant 0 : index
    %c0_4 = arith.constant 0 : index
    %3 = vector.load %arg4[%c0_3, %c0_4] : memref<1x32xf32, #tpu.memory_space<vmem>>, vector<1x32xf32>
    %4 = vector.broadcast %3 : vector<1x32xf32> to vector<16x32xf32>
    %5 = arith.addf %2, %4 : vector<16x32xf32>
    %cst_5 = arith.constant 0.000000e+00 : f32
    %6 = vector.broadcast %cst_5 : f32 to vector<16x32xf32>
    %7 = arith.cmpf ogt, %5, %6 : vector<16x32xf32>
    %8 = math.exp %5 : vector<16x32xf32>
    %cst_6 = arith.constant 1.000000e+00 : f32
    %9 = vector.broadcast %cst_6 : f32 to vector<16x32xf32>
    %10 = arith.subf %8, %9 : vector<16x32xf32>
    %11 = arith.select %7, %5, %10 : vector<16x32xi1>, vector<16x32xf32>
    %12 = arith.mulf %11, %11 : vector<16x32xf32>
    %c0_7 = arith.constant 0 : index
    %c0_8 = arith.constant 0 : index
    %13 = vector.load %arg7[%c0_7, %c0_8] : memref<32x4xf32, #tpu.memory_space<vmem>>, vector<32x4xf32>
    %cst_9 = arith.constant dense<0.000000e+00> : vector<16x4xf32>
    %14 = tpu.matmul %12, %13, %cst_9 {dimension_numbers = #tpu.dot_dimension_numbers<[1], [0], [0], [1], [0, 0, 1, 1], [], []>} : vector<16x32xf32>, vector<32x4xf32>, vector<16x4xf32> -> vector<16x4xf32>
    %15 = math.rsqrt %14 : vector<16x4xf32>
    %c0_10 = arith.constant 0 : index
    %c0_11 = arith.constant 0 : index
    %16 = vector.load %arg7[%c0_10, %c0_11] : memref<32x4xf32, #tpu.memory_space<vmem>>, vector<32x4xf32>
    %cst_12 = arith.constant dense<0.000000e+00> : vector<16x32xf32>
    %17 = tpu.matmul %15, %16, %cst_12 {dimension_numbers = #tpu.dot_dimension_numbers<[1], [1], [0], [0], [0, 0, 1, 0], [], []>} : vector<16x4xf32>, vector<32x4xf32>, vector<16x32xf32> -> vector<16x32xf32>
    %18 = arith.mulf %11, %17 : vector<16x32xf32>
    %c0_13 = arith.constant 0 : index
    %c0_14 = arith.constant 0 : index
    %19 = vector.load %arg8[%c0_13, %c0_14] : memref<16x32xf32, #tpu.memory_space<vmem>>, vector<16x32xf32>
    tpu.vector_store %arg8[%c0_13, %c0_14], %18 {strides = array<i32>} : memref<16x32xf32, #tpu.memory_space<vmem>>, vector<16x32xf32>,
    %c0_15 = arith.constant 0 : index
    %c0_16 = arith.constant 0 : index
    %20 = vector.load %arg2[%c0_15, %c0_16] : memref<16x64xf32, #tpu.memory_space<vmem>>, vector<16x64xf32>
    %c0_17 = arith.constant 0 : index
    %c0_18 = arith.constant 0 : index
    %21 = vector.load %arg5[%c0_17, %c0_18] : memref<64x32xf32, #tpu.memory_space<vmem>>, vector<64x32xf32>
    %cst_19 = arith.constant dense<0.000000e+00> : vector<16x32xf32>
    %22 = tpu.matmul %20, %21, %cst_19 {dimension_numbers = #tpu.dot_dimension_numbers<[1], [0], [0], [1], [0, 0, 1, 1], [], []>} : vector<16x64xf32>, vector<64x32xf32>, vector<16x32xf32> -> vector<16x32xf32>
    %c0_20 = arith.constant 0 : index
    %c0_21 = arith.constant 0 : index
    %23 = vector.load %arg6[%c0_20, %c0_21] : memref<1x32xf32, #tpu.memory_space<vmem>>, vector<1x32xf32>
    %24 = vector.broadcast %23 : vector<1x32xf32> to vector<16x32xf32>
    %25 = arith.addf %22, %24 : vector<16x32xf32>
    %c0_22 = arith.constant 0 : index
    %c0_23 = arith.constant 0 : index
    %26 = vector.load %arg9[%c0_22, %c0_23] : memref<16x32xf32, #tpu.memory_space<vmem>>, vector<16x32xf32>
    tpu.vector_store %arg9[%c0_22, %c0_23], %25 {strides = array<i32>} : memref<16x32xf32, #tpu.memory_space<vmem>>, vector<16x32xf32>,
    return
  }
  func.func @transform_0(%arg0: i32) -> (i32, i32) {
    %c0_i32 = arith.constant 0 : i32
    %c0_i32_0 = arith.constant 0 : i32
    return %arg0, %c0_i32 : i32, i32
  }
  func.func @transform_1(%arg0: i32) -> (i32, i32) {
    %c0_i32 = arith.constant 0 : i32
    %c0_i32_0 = arith.constant 0 : i32
    return %arg0, %c0_i32 : i32, i32
  }
  func.func @transform_2(%arg0: i32) -> (i32, i32) {
    %c0_i32 = arith.constant 0 : i32
    %c0_i32_0 = arith.constant 0 : i32
    %c0_i32_1 = arith.constant 0 : i32
    return %c0_i32, %c0_i32_0 : i32, i32
  }
  func.func @transform_3(%arg0: i32) -> (i32, i32) {
    %c0_i32 = arith.constant 0 : i32
    %c0_i32_0 = arith.constant 0 : i32
    %c0_i32_1 = arith.constant 0 : i32
    return %c0_i32, %c0_i32_0 : i32, i32
  }
  func.func @transform_4(%arg0: i32) -> (i32, i32) {
    %c0_i32 = arith.constant 0 : i32
    %c0_i32_0 = arith.constant 0 : i32
    %c0_i32_1 = arith.constant 0 : i32
    return %c0_i32, %c0_i32_0 : i32, i32
  }
  func.func @transform_5(%arg0: i32) -> (i32, i32) {
    %c0_i32 = arith.constant 0 : i32
    %c0_i32_0 = arith.constant 0 : i32
    %c0_i32_1 = arith.constant 0 : i32
    return %c0_i32, %c0_i32_0 : i32, i32
  }
  func.func @transform_6(%arg0: i32) -> (i32, i32) {
    %c0_i32 = arith.constant 0 : i32
    %c0_i32_0 = arith.constant 0 : i32
    %c0_i32_1 = arith.constant 0 : i32
    return %c0_i32, %c0_i32_0 : i32, i32
  }
  func.func @transform_7(%arg0: i32) -> (i32, i32) {
    %c0_i32 = arith.constant 0 : i32
    %c0_i32_0 = arith.constant 0 : i32
    return %arg0, %c0_i32 : i32, i32
  }
  func.func @transform_8(%arg0: i32) -> (i32, i32) {
    %c0_i32 = arith.constant 0 : i32
    %c0_i32_0 = arith.constant 0 : i32
    return %arg0, %c0_i32 : i32, i32
  }
}

</mosaic_0001>

<llo_original>
// kernel: tpu_custom_call.1
$region0: #{tpu_custom_call.1}
  #allocation0 [shape = 'u32[]', space=smem, size = 0x4, offset = 0x4, fixed_abs, tag = 'smem constant byte address 0x4 - core index']
  #allocation1 [shape = 'u32[72,128]{1,0:T(1,128)}', space=vmem, size = 0x9000, scoped, tag = 'internal scratch']
  %s0 = inlined_call_operand.vmem [shape: f32[16,64], index: 0, kind: input, shape index: {}]
  %s1 = inlined_call_operand.vmem [shape: f32[16,64], index: 1, kind: input, shape index: {}]
  %s2 = inlined_call_operand.vmem [shape: f32[64,32], index: 2, kind: input, shape index: {}]
  %s3 = inlined_call_operand.vmem [shape: f32[1,32], index: 3, kind: input, shape index: {}]
  %s4 = inlined_call_operand.vmem [shape: f32[64,32], index: 4, kind: input, shape index: {}]
  %s5 = inlined_call_operand.vmem [shape: f32[1,32], index: 5, kind: input, shape index: {}]
  %s6 = inlined_call_operand.vmem [shape: f32[32,4], index: 6, kind: input, shape index: {}]
  %s7 = inlined_call_operand.hbm [shape: f32[16,32], index: 7, kind: output, shape index: {0}]
  %s8 = inlined_call_operand.hbm [shape: f32[16,32], index: 8, kind: output, shape index: {1}]
  %9 = xla_tuple %s7, %s8
  %s10 = sld [smem:[#allocation0]]
  $region46: #{tpu_custom_call.1} parent=0
    _
  %s12 = ssub.s32 1, %s10
  %s13 = scalar_select 0, %s12, %s10
  $region1: #{tpu_custom_call.1} parent=0
    #allocation2 [shape = 'u8[8192]{0}', space=vmem, size = 0x2000, scoped, tag = 'output window, operand 0, single buffered']
    #allocation3 [shape = 's32[1]{0}', space=sflag, size = 0x4, scoped, tag = 'scoped memory for tpu_custom_call.1']
    #allocation4 [shape = 'u8[8192]{0}', space=vmem, size = 0x2000, scoped, tag = 'output window, operand 1, single buffered']
    #allocation5 [shape = 's32[1]{0}', space=sflag, size = 0x4, scoped, tag = 'scoped memory for tpu_custom_call.1']
    %14 = vsyncpa [#allocation3], 0
    %15 = vsyncpa [#allocation5], 0
    // Predicated region
    $region2: #{tpu_custom_call.1} parent=1 // pred_check
      _
    $region3: #{tpu_custom_call.1} parent=1 // pred_check_branch
      %17 = sbr.rel (0) target = $region5
    $region4: #{tpu_custom_call.1} parent=1 // pred_region
      _
    $region5: #{tpu_custom_call.1} parent=1 // pred_fallthru
      _
    // Predicated region
    $region6: #{tpu_custom_call.1} parent=1 // pred_check
      _
    $region7: #{tpu_custom_call.1} parent=1 // pred_check_branch
      %19 = sbr.rel (0) target = $region9
    $region8: #{tpu_custom_call.1} parent=1 // pred_region
      _
    $region9: #{tpu_custom_call.1} parent=1 // pred_fallthru
      _
    // Predicated region
    $region10: #{tpu_custom_call.1} parent=1 // pred_check
      _
    $region11: #{tpu_custom_call.1} parent=1 // pred_check_branch
      %21 = sbr.rel (0) target = $region13
    $region12: #{tpu_custom_call.1} parent=1 // pred_region
      _
    $region13: #{tpu_custom_call.1} parent=1 // pred_fallthru
      _
    // Predicated region
    $region14: #{tpu_custom_call.1} parent=1 // pred_check
      _
    $region15: #{tpu_custom_call.1} parent=1 // pred_check_branch
      %23 = sbr.rel (0) target = $region17
    $region16: #{tpu_custom_call.1} parent=1 // pred_region
      _
    $region17: #{tpu_custom_call.1} parent=1 // pred_fallthru
      _
    // Predicated region
    $region18: #{tpu_custom_call.1} parent=1 // pred_check
      _
    $region19: #{tpu_custom_call.1} parent=1 // pred_check_branch
      %25 = sbr.rel (0) target = $region21
    $region20: #{tpu_custom_call.1} parent=1 // pred_region
      _
    $region21: #{tpu_custom_call.1} parent=1 // pred_fallthru
      _
    // Predicated region
    $region22: #{tpu_custom_call.1} parent=1 // pred_check
      _
    $region23: #{tpu_custom_call.1} parent=1 // pred_check_branch
      %27 = sbr.rel (0) target = $region25
    $region24: #{tpu_custom_call.1} parent=1 // pred_region
      _
    $region25: #{tpu_custom_call.1} parent=1 // pred_fallthru
      _
    // Predicated region
    $region26: #{tpu_custom_call.1} parent=1 // pred_check
      _
    $region27: #{tpu_custom_call.1} parent=1 // pred_check_branch
      %29 = sbr.rel (0) target = $region29
    $region28: #{tpu_custom_call.1} parent=1 // pred_region
      _
    $region29: #{tpu_custom_call.1} parent=1 // pred_fallthru
      _
    %v30 = vld [vmem:[%s0] sm:$0xff]
    %v31 = vld [vmem:[%s0 + $0x8] sm:$0xff]
    %v32 = vld [vmem:[%s2] sm:$0xff]
    %v33 = vld [vmem:[%s2 + $0x8] sm:$0xff]
    %v34 = vld [vmem:[%s2 + $0x10] sm:$0xff]
    %v35 = vld [vmem:[%s2 + $0x18] sm:$0xff]
    %v36 = vld [vmem:[%s2 + $0x20] sm:$0xff]
    %v37 = vld [vmem:[%s2 + $0x28] sm:$0xff]
    %v38 = vld [vmem:[%s2 + $0x30] sm:$0xff]
    %v39 = vld [vmem:[%s2 + $0x38] sm:$0xff]
    %v40 = vld [vmem:[%s3] sm:$0x1]
    %v42 = vperm.slane %v40, 0
    %vm44 = vcmask 523264
    %v46 = vsel %vm44, %v30, 0
    %v49 = vsel %vm44, %v31, 0
    %51 = vmatpush.msra.mxu0 0.0
    %52 = vmatpush.msra.mxu0 0.0
    %53 = vmatpush.msra.mxu0 0.0
    %54 = vmatpush.msra.mxu0 0.0
    %55 = vmatpush.msra.mxu0 0.0
    %56 = vmatpush.msra.mxu0 0.0
    %57 = vmatpush.msra.mxu0 0.0
    %58 = vmatpush.msra.mxu0 0.0
    %59 = vmatpush.msra.mxu0 %v39
    %60 = vmatpush.msra.mxu0 %v38
    %61 = vmatpush.msra.mxu0 %v37
    %62 = vmatpush.msra.mxu0 %v36
    %63 = vmatpush.msra.mxu0 %v35
    %64 = vmatpush.msra.mxu0 %v34
    %65 = vmatpush.msra.mxu0 %v33
    %66 = vmatpush.msra.mxu0 %v32
    %67 = vmatmul.f32.gmra.mxu0 %v46
    %v68 = vpop.f32.mrf.mxu0
    %v69 = vadd.f32 %v42, %v68
    %70 = vmatmul.f32.gmra.mxu0 %v49
    %v71 = vpop.f32.mrf.mxu0
    %v72 = vadd.f32 %v42, %v71
    %73 = vdwg.mxu0
    %vm74 = vcmp.gt.f32.partialorder %v69, 0.0
    %vm75 = vcmp.gt.f32.partialorder %v72, 0.0
    %v76 = vmul.f32 %v69, 1.442695
    %v77 = vpow.pop %v76
    %v78 = vmul.f32 %v72, 1.442695
    %v79 = vpow.pop %v78
    %v80 = vsub.f32 %v77, 1.0
    %v81 = vsub.f32 %v79, 1.0
    %v82 = vsel %vm74, %v69, %v80
    %v83 = vsel %vm75, %v72, %v81
    %v84 = vmul.f32 %v82, %v82
    %v85 = vmul.f32 %v83, %v83
    %v86 = vld [vmem:[%s6] sm:$0xff]
    %v87 = vld [vmem:[%s6 + $0x8] sm:$0xff]
    %v88 = vld [vmem:[%s6 + $0x10] sm:$0xff]
    %v89 = vld [vmem:[%s6 + $0x18] sm:$0xff]
    %vm90 = vcmask 261120
    %v92 = vsel %vm90, %v84, 0
    %v95 = vsel %vm90, %v85, 0
    %97 = vmatpush.msra.mxu0 0.0
    %98 = vmatpush.msra.mxu0 0.0
    %99 = vmatpush.msra.mxu0 0.0
    %100 = vmatpush.msra.mxu0 0.0
    %101 = vmatpush.msra.mxu0 0.0
    %102 = vmatpush.msra.mxu0 0.0
    %103 = vmatpush.msra.mxu0 0.0
    %104 = vmatpush.msra.mxu0 0.0
    %105 = vmatpush.msra.mxu0 0.0
    %106 = vmatpush.msra.mxu0 0.0
    %107 = vmatpush.msra.mxu0 0.0
    %108 = vmatpush.msra.mxu0 0.0
    %109 = vmatpush.msra.mxu0 %v89
    %110 = vmatpush.msra.mxu0 %v88
    %111 = vmatpush.msra.mxu0 %v87
    %112 = vmatpush.msra.mxu0 %v86
    %113 = vmatmul.f32.gmra.mxu0 %v92
    %v114 = vpop.f32.mrf.mxu0
    %v115 = vadd.f32 0.0, %v114
    %116 = vmatmul.f32.gmra.mxu0 %v95
    %v117 = vpop.f32.mrf.mxu0
    %v118 = vadd.f32 0.0, %v117
    %119 = vdwg.mxu0
    %v120 = vrsqrt.pop %v115
    %v121 = vmul.f32 %v120, %v115
    %v122 = vmul.f32 %v121, %v120
    %v123 = vmul.f32 0.5, %v122
    %v124 = vsub.f32 1.5, %v123
    %v125 = vmul.f32 %v120, %v124
    %vm126 = vweird.f32 %v115
    %vm127 = vweird.f32 %v120
    %vm128 = vmor %vm126, %vm127
    %v129 = vsel %vm128, %v120, %v125
    %v130 = vrsqrt.pop %v118
    %v131 = vmul.f32 %v130, %v118
    %v132 = vmul.f32 %v131, %v130
    %v133 = vmul.f32 0.5, %v132
    %v134 = vsub.f32 1.5, %v133
    %v135 = vmul.f32 %v130, %v134
    %vm136 = vweird.f32 %v118
    %vm137 = vweird.f32 %v130
    %vm138 = vmor %vm136, %vm137
    %v139 = vsel %vm138, %v130, %v135
    %vm140 = vcmask 31744
    %v142 = vsel %vm140, %v129, 0
    %v145 = vsel %vm140, %v139, 0
    %v148 = vsel %vm140, %v86, 0
    %v151 = vsel %vm140, %v87, 0
    %v154 = vsel %vm140, %v88, 0
    %v157 = vsel %vm140, %v89, 0
    %159 = vmatpush.xpose.msra.mxu0 0.0
    %160 = vmatpush.xpose.msra.mxu0 0.0
    %161 = vmatpush.xpose.msra.mxu0 0.0
    %162 = vmatpush.xpose.msra.mxu0 0.0
    %163 = vmatpush.xpose.msra.mxu0 0.0
    %164 = vmatpush.xpose.msra.mxu0 0.0
    %165 = vmatpush.xpose.msra.mxu0 0.0
    %166 = vmatpush.xpose.msra.mxu0 0.0
    %167 = vmatpush.xpose.msra.mxu0 0.0
    %168 = vmatpush.xpose.msra.mxu0 0.0
    %169 = vmatpush.xpose.msra.mxu0 0.0
    %170 = vmatpush.xpose.msra.mxu0 0.0
    %171 = vmatpush.xpose.msra.mxu0 %v157
    %172 = vmatpush.xpose.msra.mxu0 %v154
    %173 = vmatpush.xpose.msra.mxu0 %v151
    %174 = vmatpush.xpose.msra.mxu0 %v148
    %175 = vmatmul.f32.gmra.mxu0 %v142
    %v176 = vpop.f32.mrf.mxu0
    %v177 = vadd.f32 0.0, %v176
    %178 = vmatmul.f32.gmra.mxu0 %v145
    %v179 = vpop.f32.mrf.mxu0
    %v180 = vadd.f32 0.0, %v179
    %181 = vdwg.mxu0
    %v182 = vmul.f32 %v82, %v177
    %v183 = vmul.f32 %v83, %v180
    %184 = vst.msk [vmem:[#allocation2] sm:$0xff] %vm90, %v182
    %185 = vst.msk [vmem:[#allocation2 + $0x8] sm:$0xff] %vm90, %v183
    %v186 = vld [vmem:[%s1] sm:$0xff]
    %v187 = vld [vmem:[%s1 + $0x8] sm:$0xff]
    %v188 = vld [vmem:[%s4] sm:$0xff]
    %v189 = vld [vmem:[%s4 + $0x8] sm:$0xff]
    %v190 = vld [vmem:[%s4 + $0x10] sm:$0xff]
    %v191 = vld [vmem:[%s4 + $0x18] sm:$0xff]
    %v192 = vld [vmem:[%s4 + $0x20] sm:$0xff]
    %v193 = vld [vmem:[%s4 + $0x28] sm:$0xff]
    %v194 = vld [vmem:[%s4 + $0x30] sm:$0xff]
    %v195 = vld [vmem:[%s4 + $0x38] sm:$0xff]
    %v196 = vld [vmem:[%s5] sm:$0x1]
    %v198 = vperm.slane %v196, 0
    %v201 = vsel %vm44, %v186, 0
    %v204 = vsel %vm44, %v187, 0
    %206 = vmatpush.msra.mxu0 0.0
    %207 = vmatpush.msra.mxu0 0.0
    %208 = vmatpush.msra.mxu0 0.0
    %209 = vmatpush.msra.mxu0 0.0
    %210 = vmatpush.msra.mxu0 0.0
    %211 = vmatpush.msra.mxu0 0.0
    %212 = vmatpush.msra.mxu0 0.0
    %213 = vmatpush.msra.mxu0 0.0
    %214 = vmatpush.msra.mxu0 %v195
    %215 = vmatpush.msra.mxu0 %v194
    %216 = vmatpush.msra.mxu0 %v193
    %217 = vmatpush.msra.mxu0 %v192
    %218 = vmatpush.msra.mxu0 %v191
    %219 = vmatpush.msra.mxu0 %v190
    %220 = vmatpush.msra.mxu0 %v189
    %221 = vmatpush.msra.mxu0 %v188
    %222 = vmatmul.f32.gmra.mxu0 %v201
    %v223 = vpop.f32.mrf.mxu0
    %v224 = vadd.f32 %v198, %v223
    %225 = vmatmul.f32.gmra.mxu0 %v204
    %v226 = vpop.f32.mrf.mxu0
    %v227 = vadd.f32 %v198, %v226
    %228 = vdwg.mxu0
    %229 = vst.msk [vmem:[#allocation4] sm:$0xff] %vm90, %v224
    %230 = vst.msk [vmem:[#allocation4 + $0x8] sm:$0xff] %vm90, %v227
    // Predicated region
    $region30: #{tpu_custom_call.1} parent=1 // pred_check
      _
    $region31: #{tpu_custom_call.1} parent=1 // pred_check_branch
      %232 = sbr.rel (0) target = $region33
    $region32: #{tpu_custom_call.1} parent=1 // pred_region
      %234 = vsyncadd [#allocation3], 0
      %s235 = sshll.u32 [#allocation2], 4
      %s236 = int_to_ptr.vmem [resolvable:$true] %s235
      %s237 = sshll.u32 %s7, 4
      %s238 = int_to_ptr.hbm [resolvable:$true] %s237
      %243 = dma.vmem_to_hbm [thread:$0]  %s236, 256, %s238, [#allocation3], 128, 128, 8
    $region33: #{tpu_custom_call.1} parent=1 // pred_fallthru
      _
    // Predicated region
    $region34: #{tpu_custom_call.1} parent=1 // pred_check
      _
    $region35: #{tpu_custom_call.1} parent=1 // pred_check_branch
      %245 = sbr.rel (0) target = $region37
    $region36: #{tpu_custom_call.1} parent=1 // pred_region
      %247 = vsyncadd [#allocation5], 0
      %s248 = sshll.u32 [#allocation4], 4
      %s249 = int_to_ptr.vmem [resolvable:$true] %s248
      %s250 = sshll.u32 %s8, 4
      %s251 = int_to_ptr.hbm [resolvable:$true] %s250
      %256 = dma.vmem_to_hbm [thread:$0]  %s249, 256, %s251, [#allocation5], 128, 128, 8
    $region37: #{tpu_custom_call.1} parent=1 // pred_fallthru
      _
    // Predicated region
    $region38: #{tpu_custom_call.1} parent=1 // pred_check
      _
    $region39: #{tpu_custom_call.1} parent=1 // pred_check_branch
      %258 = sbr.rel (0) target = $region41
    $region40: #{tpu_custom_call.1} parent=1 // pred_region
      %260 = dma.done [#allocation3], 256
    $region41: #{tpu_custom_call.1} parent=1 // pred_fallthru
      _
    // Predicated region
    $region42: #{tpu_custom_call.1} parent=1 // pred_check
      _
    $region43: #{tpu_custom_call.1} parent=1 // pred_check_branch
      %262 = sbr.rel (0) target = $region45
    $region44: #{tpu_custom_call.1} parent=1 // pred_region
      %264 = dma.done [#allocation5], 256
    $region45: #{tpu_custom_call.1} parent=1 // pred_fallthru
      _
    %265 = vsyncpa [#allocation3], 1
    %266 = vsyncpa [#allocation5], 1

</llo_original>
